<compile_context>
chip_gen: v5e
topology: v5e:2x2
jax: 0.10.0
libtpu: 0.0.40
codegen_flags: <defaults>
</compile_context>

<pallas_src>
import functools

import jax
import jax.numpy as jnp
import numpy as np
from jax import lax
from jax.experimental import pallas as pl
from jax.experimental.pallas import tpu as pltpu

EPS = 1e-5      # PyTorch InstanceNorm2d default eps
SLOPE = 0.2     # LeakyReLU negative_slope


# --------------------------------------------------------------------------- #
# Kernel A: one sample per grid step, whole spatial extent resident.
# --------------------------------------------------------------------------- #
def _whole_s_kernel(p_ref, w_ref, o_ref, *, s_valid):
    """p_ref: (KP, S_pad) transposed im2col patches of one sample.
       w_ref: (Cout, KP)  conv weight (im2col-flattened, (kh,kw,cin) order).
       o_ref: (Cout, S_pad) conv + instance-norm + leaky-relu, NCHW-ready.
    Conv bias omitted: exactly cancelled by the instance-norm mean subtraction.
    Padded columns hold zero patches -> zero conv, and are excluded from the
    statistics via s_valid and the n_pad*mean^2 correction below."""
    conv = jnp.dot(w_ref[...], p_ref[...],
                   preferred_element_type=jnp.float32)            # (Cout, S_pad) f32
    s_pad = conv.shape[1]
    n_pad = float(s_pad - s_valid)
    inv_s = 1.0 / float(s_valid)

    s1 = jnp.sum(conv, axis=1, keepdims=True)                     # pads contribute 0
    mean = s1 * inv_s
    c = conv - mean
    # Centered variance over the valid columns only (each pad column adds mean^2).
    css = jnp.sum(c * c, axis=1, keepdims=True) - n_pad * mean * mean
    var = jnp.maximum(css * inv_s, 0.0)
    scale = lax.rsqrt(var + EPS)                                   # EUP slot
    y = c * scale
    o_ref[...] = jnp.maximum(y, SLOPE * y).astype(o_ref.dtype)     # LeakyReLU(0.2)


# --------------------------------------------------------------------------- #
# Kernel B: S-tiled two-pass path for large images (bounded VMEM).
# grid = (N, 2, ST): axis0 sample ('parallel'), axis1 pass (0=moments, 1=apply),
# axis2 spatial tile ('arbitrary').
# --------------------------------------------------------------------------- #
def _s_tiled_kernel(p_ref, w_ref, o_ref, s1_ref, s2_ref, *, s_valid):
    p = pl.program_id(1)
    s = pl.program_id(2)

    @pl.when(jnp.logical_and(p == 0, s == 0))
    def _init():
        s1_ref[...] = jnp.zeros_like(s1_ref)
        s2_ref[...] = jnp.zeros_like(s2_ref)

    conv = jnp.dot(w_ref[...], p_ref[...],
                   preferred_element_type=jnp.float32)             # (Cout, TS) f32

    @pl.when(p == 0)
    def _moments():
        s1_ref[...] += jnp.sum(conv, axis=1, keepdims=True)
        s2_ref[...] += jnp.sum(conv * conv, axis=1, keepdims=True)

    @pl.when(p == 1)
    def _apply():
        inv_s = 1.0 / float(s_valid)
        mean = s1_ref[...] * inv_s
        # Streaming moments: E[x^2] - mean^2 (clamped). Padded columns are exact
        # zeros so they drop out of both sums; dividing by the true S is exact.
        var = jnp.maximum(s2_ref[...] * inv_s - mean * mean, 0.0)
        scale = lax.rsqrt(var + EPS)
        y = (conv - mean) * scale
        o_ref[...] = jnp.maximum(y, SLOPE * y).astype(o_ref.dtype)


# --------------------------------------------------------------------------- #
# Wrapper
# --------------------------------------------------------------------------- #
def _vmem_limit_bytes():
    """Per-generation VMEM cap: physical capacity minus headroom, capped at 100 MiB."""
    cap = 64 << 20                                    # conservative (v7x per-TC VMEM)
    try:
        info = pltpu.get_tpu_info()
        for attr in ("vmem_capacity_bytes", "vmem_size_bytes", "vmem_bytes"):
            v = getattr(info, attr, None)
            if v:
                cap = int(v)
                break
    except Exception:
        pass
    return int(max(min(cap - (12 << 20), 100 << 20), 32 << 20))


def discriminator_block_pallas(x_nchw, weight, bias=None, stride=2, padding=1,
                               compute_dtype=jnp.bfloat16,
                               out_dtype=jnp.float32,
                               s_block=None):
    """Conv2d(k=3, stride, padding) -> InstanceNorm2d(affine=False) -> LeakyReLU(0.2).

    x_nchw: (N, Cin, H, W). weight: (Cout, Cin, K, K). bias: (Cout,) -- accepted for
    API parity but mathematically redundant under InstanceNorm2d(affine=False).
    compute_dtype: dtype of the patch/weight streams fed to the MXU (default bf16,
      halves the dominant input read; accumulation + norm math stay f32).
    out_dtype: output element dtype (bf16 halves the largest HBM write when the
      next layer accepts it).
    s_block: force the spatial tile (multiple of 128) of the two-pass S-tiled
      path; None = auto (whole-S per sample when it fits the VMEM budget).
    """
    del bias  # exactly cancelled by per-channel mean subtraction

    N, Cin, H, W = x_nchw.shape
    Cout, _, K, _ = weight.shape
    Hout = (H + 2 * padding - K) // stride + 1
    Wout = (W + 2 * padding - K) // stride + 1
    S = Hout * Wout
    KP = K * K * Cin

    # --- glue: pad + transposed im2col (stays NCHW; no transposes) -------------
    # TODO(synk): eliminate this materialized (N, KP, S) HBM round-trip by building
    # patch rows in-kernel from the padded image (memory_space=pl.ANY + strided
    # loads) or via CompilerParams(allow_input_fusion=...).
    xp = jnp.pad(x_nchw, ((0, 0), (0, 0), (padding, padding), (padding, padding)))
    cols = []
    for kh in range(K):
        for kw in range(K):
            cols.append(
                xp[:, :, kh:kh + Hout * stride:stride, kw:kw + Wout * stride:stride]
                .reshape(N, Cin, S))
    patches_t = jnp.concatenate(cols, axis=1)                            # (N, KP, S)

    # weight (Cout, Cin, K, K) -> (Cout, K, K, Cin) -> (Cout, KP); matches the
    # (kh, kw, cin) row ordering of patches_t.
    w2 = jnp.transpose(weight, (0, 2, 3, 1)).reshape(Cout, KP).astype(compute_dtype)

    in_item = jnp.dtype(compute_dtype).itemsize
    out_item = jnp.dtype(out_dtype).itemsize
    vmem_limit = _vmem_limit_bytes()

    # --- block / grid selection -------------------------------------------------
    # Lane-dense stores: pad S to a multiple of 128 (padded columns are zero).
    s_pad = pl.cdiv(S, 128) * 128
    # VMEM bytes per spatial column: double-buffered patches + output, plus the
    # live f32 conv intermediate and temporaries.
    per_col = 2 * KP * in_item + 2 * Cout * out_item + 3 * Cout * 4
    budget = max(min(vmem_limit // 2, 48 << 20), 4 << 20)

    if s_block is not None:
        tile_s = min(max(128, (int(s_block) // 128) * 128), s_pad)
        s_pad = pl.cdiv(s_pad, tile_s) * tile_s
    elif per_col * s_pad <= budget and N >= 2:
        tile_s = None                                  # whole-S, one sample / step
    else:
        tile_s = int(max(128, min((budget // per_col) // 128 * 128, s_pad)))
        s_pad = pl.cdiv(s_pad, tile_s) * tile_s        # tiles divide evenly

    if s_pad != S:
        patches_t = jnp.pad(patches_t, ((0, 0), (0, 0), (0, s_pad - S)))
    patches_t = patches_t.astype(compute_dtype)

    if tile_s is None:
        # ---- whole-S path: grid=(N,), one matmul per step -----------------------
        out = pl.pallas_call(
            functools.partial(_whole_s_kernel, s_valid=S),
            out_shape=jax.ShapeDtypeStruct((N, Cout, s_pad), out_dtype),
            grid_spec=pltpu.PrefetchScalarGridSpec(
                num_scalar_prefetch=0,
                grid=(N,),
                in_specs=[
                    pl.BlockSpec((None, KP, s_pad), lambda n: (n, 0, 0)),
                    pl.BlockSpec((Cout, KP), lambda n: (0, 0)),
                ],
                out_specs=pl.BlockSpec((None, Cout, s_pad), lambda n: (n, 0, 0)),
            ),
            compiler_params=pltpu.CompilerParams(
                dimension_semantics=("parallel",),
                vmem_limit_bytes=vmem_limit,
            ),
        )(patches_t, w2)
    else:
        # ---- S-tiled two-pass path: grid=(N, 2, ST) ------------------------------
        st = s_pad // tile_s
        out = pl.pallas_call(
            functools.partial(_s_tiled_kernel, s_valid=S),
            out_shape=jax.ShapeDtypeStruct((N, Cout, s_pad), out_dtype),
            grid_spec=pltpu.PrefetchScalarGridSpec(
                num_scalar_prefetch=0,
                grid=(N, 2, st),
                in_specs=[
                    pl.BlockSpec((None, KP, tile_s), lambda n, p, s: (n, 0, s)),
                    pl.BlockSpec((Cout, KP), lambda n, p, s: (0, 0)),
                ],
                # During the moments pass (p == 0) the output window stays pinned
                # at tile 0, so every output tile is written back exactly once
                # (with its pass-1 values).
                out_specs=pl.BlockSpec((None, Cout, tile_s),
                                       lambda n, p, s: (n, 0, s * p)),
                scratch_shapes=[pltpu.VMEM((Cout, 1), jnp.float32),
                                pltpu.VMEM((Cout, 1), jnp.float32)],
            ),
            compiler_params=pltpu.CompilerParams(
                dimension_semantics=("parallel", "arbitrary", "arbitrary"),
                vmem_limit_bytes=vmem_limit,
            ),
        )(patches_t, w2)

    # Output is channel-major: slice off the spatial pad, reshape to NCHW.
    return out[:, :, :S].reshape(N, Cout, Hout, Wout)


def _reference(x_nchw, weight, bias, stride=2, padding=1):
    """Plain-JAX reference of Conv2d(+bias) + InstanceNorm2d + LeakyReLU (NCHW)."""
    conv = lax.conv_general_dilated(
        x_nchw, weight,
        window_strides=(stride, stride),
        padding=((padding, padding), (padding, padding)),
        dimension_numbers=("NCHW", "OIHW", "NCHW"),
    ) + bias.reshape(1, -1, 1, 1)
    mean = jnp.mean(conv, axis=(2, 3), keepdims=True)
    var = jnp.mean((conv - mean) ** 2, axis=(2, 3), keepdims=True)
    normed = (conv - mean) * lax.rsqrt(var + EPS)
    return jnp.where(normed >= 0, normed, SLOPE * normed)


if __name__ == "__main__":
    key = jax.random.PRNGKey(0)
    k_x, k_w, k_b, k_x2 = jax.random.split(key, 4)

    Cin, Cout, K = 3, 64, 3
    fan_in = Cin * K * K
    weight = jax.random.normal(k_w, (Cout, Cin, K, K), dtype=jnp.float32) / jnp.sqrt(fan_in)
    bias = jax.random.normal(k_b, (Cout,), dtype=jnp.float32) * 0.1

    # --- small case (N=2, 16x16): whole-S path, grid=(2,) -------------------------
    x = jax.random.normal(k_x, (2, Cin, 16, 16), dtype=jnp.float32)
    ref = jax.block_until_ready(_reference(x, weight, bias))

    # f32 streaming: tight tolerance (also proves the conv bias is redundant --
    # the kernel never sees it while the reference applies it).
    out_f32 = jax.block_until_ready(
        discriminator_block_pallas(x, weight, bias, compute_dtype=jnp.float32))
    np.testing.assert_allclose(np.asarray(out_f32), np.asarray(ref), rtol=1e-4, atol=1e-4)

    # default bf16 streaming (f32 accumulation / norm math): loose tolerance.
    out_bf16 = jax.block_until_ready(discriminator_block_pallas(x, weight, bias))
    np.testing.assert_allclose(np.asarray(out_bf16), np.asarray(ref), rtol=5e-2, atol=5e-2)

    # bf16 output stream option (halves the dominant HBM write).
    out_bf16o = jax.block_until_ready(
        discriminator_block_pallas(x, weight, bias, out_dtype=jnp.bfloat16))
    np.testing.assert_allclose(np.asarray(out_bf16o, dtype=np.float32),
                               np.asarray(ref), rtol=5e-2, atol=5e-2)

    # --- S-tiled two-pass path (forced): N=2, 32x32 -> S=256, tile=128 ------------
    x2 = jax.random.normal(k_x2, (2, Cin, 32, 32), dtype=jnp.float32)
    ref2 = jax.block_until_ready(_reference(x2, weight, bias))
    out_tiled = jax.block_until_ready(
        discriminator_block_pallas(x2, weight, bias, compute_dtype=jnp.float32,
                                   s_block=128))
    np.testing.assert_allclose(np.asarray(out_tiled), np.asarray(ref2),
                               rtol=1e-4, atol=1e-4)

    print("KERNEL_OK")
</pallas_src>

<mosaic_0001>
module attributes {stable_mosaic.version = 11 : i64} {
  func.func @_whole_s_kernel(%arg0: i32, %arg1: memref<1x27x128xf32, #tpu.memory_space<vmem>>, %arg2: memref<64x27xf32, #tpu.memory_space<vmem>>, %arg3: memref<1x64x128xf32, #tpu.memory_space<vmem>>) attributes {dimension_semantics = [#tpu.dimension_semantics<parallel>], iteration_bounds = array<i64: 2>, scalar_prefetch = 0 : i64, scratch_operands = 0 : i64, tpu.core_type = #tpu.core_type<tc>, window_params = [{transform_indices = @transform_0, window_bounds = array<i64: 1, 27, 128>}, {pipeline_mode = #tpu.pipeline_mode<synchronous>, transform_indices = @transform_1, window_bounds = array<i64: 64, 27>}, {transform_indices = @transform_2, window_bounds = array<i64: 1, 64, 128>}]} {
    %c0 = arith.constant 0 : index
    %c0_0 = arith.constant 0 : index
    %0 = vector.load %arg2[%c0, %c0_0] : memref<64x27xf32, #tpu.memory_space<vmem>>, vector<64x27xf32>
    %c0_1 = arith.constant 0 : index
    %c0_2 = arith.constant 0 : index
    %c0_3 = arith.constant 0 : index
    %1 = vector.load %arg1[%c0_1, %c0_2, %c0_3] : memref<1x27x128xf32, #tpu.memory_space<vmem>>, vector<1x27x128xf32>
    %2 = vector.shape_cast %1 : vector<1x27x128xf32> to vector<27x128xf32>
    %cst = arith.constant dense<0.000000e+00> : vector<64x128xf32>
    %3 = tpu.matmul %0, %2, %cst {dimension_numbers = #tpu.dot_dimension_numbers<[1], [0], [0], [1], [0, 0, 1, 1], [], []>} : vector<64x27xf32>, vector<27x128xf32>, vector<64x128xf32> -> vector<64x128xf32>
    %cst_4 = arith.constant dense<0.000000e+00> : vector<64xf32>
    %4 = vector.multi_reduction <add>, %3, %cst_4 [1] : vector<64x128xf32> to vector<64xf32>
    %5 = vector.shape_cast %4 : vector<64xf32> to vector<64x1xf32>
    %cst_5 = arith.constant 1.562500e-02 : f32
    %6 = vector.broadcast %cst_5 : f32 to vector<64x1xf32>
    %7 = arith.mulf %5, %6 : vector<64x1xf32>
    %8 = vector.broadcast %7 : vector<64x1xf32> to vector<64x128xf32>
    %9 = arith.subf %3, %8 : vector<64x128xf32>
    %10 = arith.mulf %9, %9 : vector<64x128xf32>
    %cst_6 = arith.constant dense<0.000000e+00> : vector<64xf32>
    %11 = vector.multi_reduction <add>, %10, %cst_6 [1] : vector<64x128xf32> to vector<64xf32>
    %12 = vector.shape_cast %11 : vector<64xf32> to vector<64x1xf32>
    %cst_7 = arith.constant 6.400000e+01 : f32
    %13 = vector.broadcast %cst_7 : f32 to vector<64x1xf32>
    %14 = arith.mulf %13, %7 : vector<64x1xf32>
    %15 = arith.mulf %14, %7 : vector<64x1xf32>
    %16 = arith.subf %12, %15 : vector<64x1xf32>
    %cst_8 = arith.constant 1.562500e-02 : f32
    %17 = vector.broadcast %cst_8 : f32 to vector<64x1xf32>
    %18 = arith.mulf %16, %17 : vector<64x1xf32>
    %cst_9 = arith.constant 0.000000e+00 : f32
    %19 = vector.broadcast %cst_9 : f32 to vector<64x1xf32>
    %20 = arith.maximumf %18, %19 : vector<64x1xf32>
    %cst_10 = arith.constant 9.99999974E-6 : f32
    %21 = vector.broadcast %cst_10 : f32 to vector<64x1xf32>
    %22 = arith.addf %20, %21 : vector<64x1xf32>
    %23 = math.rsqrt %22 : vector<64x1xf32>
    %24 = vector.broadcast %23 : vector<64x1xf32> to vector<64x128xf32>
    %25 = arith.mulf %9, %24 : vector<64x128xf32>
    %cst_11 = arith.constant 2.000000e-01 : f32
    %26 = vector.broadcast %cst_11 : f32 to vector<64x128xf32>
    %27 = arith.mulf %26, %25 : vector<64x128xf32>
    %28 = arith.maximumf %25, %27 : vector<64x128xf32>
    %c0_12 = arith.constant 0 : index
    %c0_13 = arith.constant 0 : index
    %c0_14 = arith.constant 0 : index
    %29 = vector.load %arg3[%c0_12, %c0_13, %c0_14] : memref<1x64x128xf32, #tpu.memory_space<vmem>>, vector<1x64x128xf32>
    %30 = vector.shape_cast %29 : vector<1x64x128xf32> to vector<64x128xf32>
    %31 = vector.shape_cast %28 : vector<64x128xf32> to vector<1x64x128xf32>
    tpu.vector_store %arg3[%c0_12, %c0_13, %c0_14], %31 {strides = array<i32>} : memref<1x64x128xf32, #tpu.memory_space<vmem>>, vector<1x64x128xf32>,
    return
  }
  func.func @transform_0(%arg0: i32) -> (i32, i32, i32) {
    %c0_i32 = arith.constant 0 : i32
    %c0_i32_0 = arith.constant 0 : i32
    %c0_i32_1 = arith.constant 0 : i32
    return %arg0, %c0_i32, %c0_i32_0 : i32, i32, i32
  }
  func.func @transform_1(%arg0: i32) -> (i32, i32) {
    %c0_i32 = arith.constant 0 : i32
    %c0_i32_0 = arith.constant 0 : i32
    %c0_i32_1 = arith.constant 0 : i32
    return %c0_i32, %c0_i32_0 : i32, i32
  }
  func.func @transform_2(%arg0: i32) -> (i32, i32, i32) {
    %c0_i32 = arith.constant 0 : i32
    %c0_i32_0 = arith.constant 0 : i32
    %c0_i32_1 = arith.constant 0 : i32
    return %arg0, %c0_i32, %c0_i32_0 : i32, i32, i32
  }
}

</mosaic_0001>

<llo_original>
// kernel: tpu_custom_call.1
$region0: #{tpu_custom_call.1}
  #allocation0 [shape = 'u32[]', space=smem, size = 0x4, offset = 0x4, fixed_abs, tag = 'smem constant byte address 0x4 - core index']
  #allocation1 [shape = 'u32[72,128]{1,0:T(1,128)}', space=vmem, size = 0x9000, scoped, tag = 'internal scratch']
  %s0 = inlined_call_operand.vmem [shape: f32[2,27,128], index: 0, kind: input, shape index: {}]
  %s1 = inlined_call_operand.vmem [shape: f32[64,27], index: 1, kind: input, shape index: {}]
  %s2 = inlined_call_operand.hbm [shape: f32[2,64,128], index: 2, kind: output, shape index: {}]
  %s3 = sld [smem:[#allocation0]]
  $region41: #{tpu_custom_call.1} parent=0
    _
  %s5 = ssub.s32 1, %s3
  %s6 = scalar_select 0, %s5, %s3
  $region1: #{tpu_custom_call.1} parent=0
    #allocation2 [shape = 'u8[65536]{0}', space=vmem, size = 0x10000, scoped, tag = 'output window, operand 0']
    #allocation3 [shape = 's32[2]{0}', space=sflag, size = 0x8, scoped, tag = 'scoped memory for tpu_custom_call.1']
    %7 = vsyncpa [#allocation3], 0
    %s8 = scalar_lea.sflag [#allocation3], 1
    %9 = vsyncpa %s8, 0
    loop: start=0, step=1, limit=4
    $region2: #{tpu_custom_call.1} parent=1 // loop_pre_header
      _
    $region3: #{tpu_custom_call.1} parent=1 // loop_header
      %s11 = sphi 0, %s15
      %p12 = scmp.ge.s32.totalorder %s11, 4
      %s21 = sphi 0, %s23
      %s24 = sphi 0, %s21
      %s25 = sphi 0, %s24
      %s41 = sphi 0, %s25
      %s45 = sphi 0, %s45
      %s47 = sphi 0, %s45
      %s48 = sphi 0, %s47
      %s62 = sphi 0, %s48
      %s68 = sphi 0, %s70
      %s71 = sphi 0, %s68
      %s72 = sphi 0, %s71
      %s88 = sphi 0, %s72
    $region4: #{tpu_custom_call.1} parent=1 // loop_header_branch
      %14 = sbr.rel (%p12) target = $region8
    $region5: #{tpu_custom_call.1} parent=1 // loop_body
      %s16 = ssub.s32 %s11, 1
      %s17 = ssub.s32 %s11, 2
      %s18 = sadd.s32 %s11, 1
      %s19 = ssub.s32 %s11, %s18
      %p20 = scmp.eq.s32.totalorder %s19, 0
      %s22 = sadd.s32 %s21, 1
      %s23 = scalar_select %p20, %s21, %s22
      %p26 = pneg %p20
      %p27 = scmp.eq.s32.totalorder %s11, 1
      %p28 = por %p26, %p27
      %p29 = scmp.ne.s32.totalorder %s21, %s24
      %p30 = scmp.eq.s32.totalorder %s11, 0
      %p31 = por %p29, %p30
      %p32 = scmp.ne.s32.totalorder %s21, %s24
      %p33 = scmp.eq.s32.totalorder %s16, 1
      %p34 = por %p32, %p33
      %p35 = scmp.ne.s32.totalorder %s24, %s25
      %p36 = scmp.eq.s32.totalorder %s16, 0
      %p37 = por %p35, %p36
      %p38 = scmp.ne.s32.totalorder %s24, %s25
      %p39 = scmp.eq.s32.totalorder %s17, 1
      %p40 = por %p38, %p39
      %p42 = scmp.ne.s32.totalorder %s25, %s41
      %p43 = scmp.eq.s32.totalorder %s17, 0
      %p44 = por %p42, %p43
      %s46 = sadd.s32 %s45, 1
      %p49 = scmp.eq.s32.totalorder %s11, 1
      %p50 = scmp.ne.s32.totalorder %s45, %s47
      %p51 = scmp.eq.s32.totalorder %s11, 0
      %p52 = por %p50, %p51
      %p53 = scmp.ne.s32.totalorder %s45, %s47
      %p54 = scmp.eq.s32.totalorder %s16, 1
      %p55 = por %p53, %p54
      %p56 = scmp.ne.s32.totalorder %s47, %s48
      %p57 = scmp.eq.s32.totalorder %s16, 0
      %p58 = por %p56, %p57
      %p59 = scmp.ne.s32.totalorder %s47, %s48
      %p60 = scmp.eq.s32.totalorder %s17, 1
      %p61 = por %p59, %p60
      %p63 = scmp.ne.s32.totalorder %s48, %s62
      %p64 = scmp.eq.s32.totalorder %s17, 0
      %p65 = por %p63, %p64
      %s66 = ssub.s32 %s11, %s18
      %p67 = scmp.eq.s32.totalorder %s66, 0
      %s69 = sadd.s32 %s68, 1
      %s70 = scalar_select %p67, %s68, %s69
      %p73 = pneg %p67
      %p74 = scmp.eq.s32.totalorder %s11, 1
      %p75 = por %p73, %p74
      %p76 = scmp.ne.s32.totalorder %s68, %s71
      %p77 = scmp.eq.s32.totalorder %s11, 0
      %p78 = por %p76, %p77
      %p79 = scmp.ne.s32.totalorder %s68, %s71
      %p80 = scmp.eq.s32.totalorder %s16, 1
      %p81 = por %p79, %p80
      %p82 = scmp.ne.s32.totalorder %s71, %s72
      %p83 = scmp.eq.s32.totalorder %s16, 0
      %p84 = por %p82, %p83
      %p85 = scmp.ne.s32.totalorder %s71, %s72
      %p86 = scmp.eq.s32.totalorder %s17, 1
      %p87 = por %p85, %p86
      %p89 = scmp.ne.s32.totalorder %s72, %s88
      %p90 = scmp.eq.s32.totalorder %s17, 0
      %p91 = por %p89, %p90
      %p92 = scmp.le.s32.totalorder 1, %s11
      %p93 = scmp.lt.s32.totalorder %s11, 3
      %p94 = pnand %p92, %p93
      %p95 = pneg %p94
      // Predicated region
      $region9: #{tpu_custom_call.1} parent=5 // pred_check
        _
      $region10: #{tpu_custom_call.1} parent=5 // pred_check_branch
        %97 = sbr.rel (%p94) target = $region12
      $region11: #{tpu_custom_call.1} parent=5 // pred_region
        %s98 = ssub.s32 %s11, 1
        // Predicated region
        $region13: #{tpu_custom_call.1} parent=11 // pred_check
          %p99 = pneg %p58
        $region14: #{tpu_custom_call.1} parent=11 // pred_check_branch
          %101 = sbr.rel (%p99) target = $region16
        $region15: #{tpu_custom_call.1} parent=11 // pred_region
          _
        $region16: #{tpu_custom_call.1} parent=11 // pred_fallthru
          _
      $region12: #{tpu_custom_call.1} parent=5 // pred_fallthru
        _
      %p102 = scmp.lt.s32.totalorder %s11, 2
      // Predicated region
      $region17: #{tpu_custom_call.1} parent=5 // pred_check
        %p103 = pneg %p102
      $region18: #{tpu_custom_call.1} parent=5 // pred_check_branch
        %105 = sbr.rel (%p103) target = $region20
      $region19: #{tpu_custom_call.1} parent=5 // pred_region
        // Predicated region
        $region21: #{tpu_custom_call.1} parent=19 // pred_check
          %p106 = pneg %p31
        $region22: #{tpu_custom_call.1} parent=19 // pred_check_branch
          %108 = sbr.rel (%p106) target = $region24
        $region23: #{tpu_custom_call.1} parent=19 // pred_region
          %p109 = scmp.lt.s32.totalorder %s11, 1
          %s110 = scalar_select %p109, %s11, 1
          %s111 = smul.addr %s110, 4
          %s112 = smul.addr %s111, 8
          %s113 = scalar_lea.vmem %s0, %s112
        $region24: #{tpu_custom_call.1} parent=19 // pred_fallthru
          _
      $region20: #{tpu_custom_call.1} parent=5 // pred_fallthru
        _
      %p114 = scmp.le.s32.totalorder 1, %s11
      %p115 = scmp.lt.s32.totalorder %s11, 3
      %p116 = pnand %p114, %p115
      %p117 = pneg %p116
      // Predicated region
      $region25: #{tpu_custom_call.1} parent=5 // pred_check
        _
      $region26: #{tpu_custom_call.1} parent=5 // pred_check_branch
        %119 = sbr.rel (%p116) target = $region28
      $region27: #{tpu_custom_call.1} parent=5 // pred_region
        %s120 = ssub.s32 %s11, 1
        %p121 = scmp.lt.s32.totalorder %s16, 1
        %s122 = scalar_select %p121, %s16, 1
        %s123 = smul.addr %s122, 4
        %s124 = smul.addr %s123, 8
        %s125 = scalar_lea.vmem %s0, %s124
        %p126 = pneg %p37
        %p127 = pneg %p34
        %p128 = pneg %p58
        %p129 = pneg %p55
        %p130 = pneg %p84
        %p131 = pneg %p81
        %s132 = sand.u32 %s71, 1
        %s133 = scalar_lea.sflag [#allocation3], %s132
        %s134 = sand.u32 %s71, 1
        %s135 = smul.addr %s134, 64
        %s136 = scalar_lea.vmem [#allocation2], %s135
        %p137 = scmp.lt.s32.totalorder %s16, 1
        %s138 = scalar_select %p137, %s16, 1
        %s139 = smul.addr %s138, 4
        %s140 = smul.addr %s139, 8
        %s141 = scalar_lea.vmem %s0, %s140
        %v142 = vld [vmem:[%s1] sm:$0xff]
        %v143 = vld [vmem:[%s1 + $0x8] sm:$0xff]
        %v144 = vld [vmem:[%s1 + $0x10] sm:$0xff]
        %v145 = vld [vmem:[%s1 + $0x18] sm:$0xff]
        %v146 = vld [vmem:[%s1 + $0x20] sm:$0xff]
        %v147 = vld [vmem:[%s1 + $0x28] sm:$0xff]
        %v148 = vld [vmem:[%s1 + $0x30] sm:$0xff]
        %v149 = vld [vmem:[%s1 + $0x38] sm:$0xff]
        %v150 = vld [vmem:[%s141] sm:$0xff]
        %v151 = vld [vmem:[%s141 + $0x8] sm:$0xff]
        %v152 = vld [vmem:[%s141 + $0x10] sm:$0xff]
        %v153 = vld [vmem:[%s141 + $0x18] sm:$0x7]
        %vm154 = vcmask 220160
        %v156 = vsel %vm154, %v142, 0
        %v159 = vsel %vm154, %v143, 0
        %v162 = vsel %vm154, %v144, 0
        %v165 = vsel %vm154, %v145, 0
        %v168 = vsel %vm154, %v146, 0
        %v171 = vsel %vm154, %v147, 0
        %v174 = vsel %vm154, %v148, 0
        %v177 = vsel %vm154, %v149, 0
        %vm179 = vcmask 1042432
        %v181 = vsel %vm179, %v153, 0
        %183 = vmatpush.msra.mxu0 0.0
        %184 = vmatpush.msra.mxu0 0.0
        %185 = vmatpush.msra.mxu0 0.0
        %186 = vmatpush.msra.mxu0 0.0
        %187 = vmatpush.msra.mxu0 0.0
        %188 = vmatpush.msra.mxu0 0.0
        %189 = vmatpush.msra.mxu0 0.0
        %190 = vmatpush.msra.mxu0 0.0
        %191 = vmatpush.msra.mxu0 0.0
        %192 = vmatpush.msra.mxu0 0.0
        %193 = vmatpush.msra.mxu0 0.0
        %194 = vmatpush.msra.mxu0 0.0
        %195 = vmatpush.msra.mxu0 %v181
        %196 = vmatpush.msra.mxu0 %v152
        %197 = vmatpush.msra.mxu0 %v151
        %198 = vmatpush.msra.mxu0 %v150
        %199 = vmatmul.f32.gmra.mxu0 %v156
        %v200 = vpop.f32.mrf.mxu0
        %v201 = vadd.f32 0.0, %v200
        %202 = vmatmul.f32.gmra.mxu0 %v159
        %v203 = vpop.f32.mrf.mxu0
        %v204 = vadd.f32 0.0, %v203
        %205 = vmatmul.f32.gmra.mxu0 %v162
        %v206 = vpop.f32.mrf.mxu0
        %v207 = vadd.f32 0.0, %v206
        %208 = vmatmul.f32.gmra.mxu0 %v165
        %v209 = vpop.f32.mrf.mxu0
        %v210 = vadd.f32 0.0, %v209
        %211 = vmatmul.f32.gmra.mxu0 %v168
        %v212 = vpop.f32.mrf.mxu0
        %v213 = vadd.f32 0.0, %v212
        %214 = vmatmul.f32.gmra.mxu0 %v171
        %v215 = vpop.f32.mrf.mxu0
        %v216 = vadd.f32 0.0, %v215
        %217 = vmatmul.f32.gmra.mxu0 %v174
        %v218 = vpop.f32.mrf.mxu0
        %v219 = vadd.f32 0.0, %v218
        %220 = vmatmul.f32.gmra.mxu0 %v177
        %v221 = vpop.f32.mrf.mxu0
        %v222 = vadd.f32 0.0, %v221
        %223 = vdwg.mxu0
        %224 = vadd.xlane.f32.xlu0 %v201
        %v225 = vpop.xlane.xlu0 %224
        %226 = vadd.xlane.f32.xlu0 %v204
        %v227 = vpop.xlane.xlu0 %226
        %228 = vadd.xlane.f32.xlu0 %v207
        %v229 = vpop.xlane.xlu0 %228
        %230 = vadd.xlane.f32.xlu0 %v210
        %v231 = vpop.xlane.xlu0 %230
        %232 = vadd.xlane.f32.xlu0 %v213
        %v233 = vpop.xlane.xlu0 %232
        %234 = vadd.xlane.f32.xlu0 %v216
        %v235 = vpop.xlane.xlu0 %234
        %236 = vadd.xlane.f32.xlu0 %v219
        %v237 = vpop.xlane.xlu0 %236
        %238 = vadd.xlane.f32.xlu0 %v222
        %v239 = vpop.xlane.xlu0 %238
        %v240 = vmul.f32 %v225, 0.015625
        %v241 = vmul.f32 %v227, 0.015625
        %v242 = vmul.f32 %v229, 0.015625
        %v243 = vmul.f32 %v231, 0.015625
        %v244 = vmul.f32 %v233, 0.015625
        %v245 = vmul.f32 %v235, 0.015625
        %v246 = vmul.f32 %v237, 0.015625
        %v247 = vmul.f32 %v239, 0.015625
        %v248 = vsub.f32 %v201, %v240
        %v249 = vsub.f32 %v204, %v241
        %v250 = vsub.f32 %v207, %v242
        %v251 = vsub.f32 %v210, %v243
        %v252 = vsub.f32 %v213, %v244
        %v253 = vsub.f32 %v216, %v245
        %v254 = vsub.f32 %v219, %v246
        %v255 = vsub.f32 %v222, %v247
        %v256 = vmul.f32 %v248, %v248
        %v257 = vmul.f32 %v249, %v249
        %v258 = vmul.f32 %v250, %v250
        %v259 = vmul.f32 %v251, %v251
        %v260 = vmul.f32 %v252, %v252
        %v261 = vmul.f32 %v253, %v253
        %v262 = vmul.f32 %v254, %v254
        %v263 = vmul.f32 %v255, %v255
        %264 = vadd.xlane.f32.xlu0 %v256
        %v265 = vpop.xlane.xlu0 %264
        %266 = vadd.xlane.f32.xlu0 %v257
        %v267 = vpop.xlane.xlu0 %266
        %268 = vadd.xlane.f32.xlu0 %v258
        %v269 = vpop.xlane.xlu0 %268
        %270 = vadd.xlane.f32.xlu0 %v259
        %v271 = vpop.xlane.xlu0 %270
        %272 = vadd.xlane.f32.xlu0 %v260
        %v273 = vpop.xlane.xlu0 %272
        %274 = vadd.xlane.f32.xlu0 %v261
        %v275 = vpop.xlane.xlu0 %274
        %276 = vadd.xlane.f32.xlu0 %v262
        %v277 = vpop.xlane.xlu0 %276
        %278 = vadd.xlane.f32.xlu0 %v263
        %v279 = vpop.xlane.xlu0 %278
        %v280 = vmul.f32 %v240, 64.0
        %v281 = vmul.f32 %v241, 64.0
        %v282 = vmul.f32 %v242, 64.0
        %v283 = vmul.f32 %v243, 64.0
        %v284 = vmul.f32 %v244, 64.0
        %v285 = vmul.f32 %v245, 64.0
        %v286 = vmul.f32 %v246, 64.0
        %v287 = vmul.f32 %v247, 64.0
        %v288 = vmul.f32 %v280, %v240
        %v289 = vmul.f32 %v281, %v241
        %v290 = vmul.f32 %v282, %v242
        %v291 = vmul.f32 %v283, %v243
        %v292 = vmul.f32 %v284, %v244
        %v293 = vmul.f32 %v285, %v245
        %v294 = vmul.f32 %v286, %v246
        %v295 = vmul.f32 %v287, %v247
        %v296 = vsub.f32 %v265, %v288
        %v297 = vsub.f32 %v267, %v289
        %v298 = vsub.f32 %v269, %v290
        %v299 = vsub.f32 %v271, %v291
        %v300 = vsub.f32 %v273, %v292
        %v301 = vsub.f32 %v275, %v293
        %v302 = vsub.f32 %v277, %v294
        %v303 = vsub.f32 %v279, %v295
        %v304 = vmul.f32 %v296, 0.015625
        %v305 = vmul.f32 %v297, 0.015625
        %v306 = vmul.f32 %v298, 0.015625
        %v307 = vmul.f32 %v299, 0.015625
        %v308 = vmul.f32 %v300, 0.015625
        %v309 = vmul.f32 %v301, 0.015625
        %v310 = vmul.f32 %v302, 0.015625
        %v311 = vmul.f32 %v303, 0.015625
        %v312 = vmax.f32 %v304, 0.0
        %v313 = vmax.f32 %v305, 0.0
        %v314 = vmax.f32 %v306, 0.0
        %v315 = vmax.f32 %v307, 0.0
        %v316 = vmax.f32 %v308, 0.0
        %v317 = vmax.f32 %v309, 0.0
        %v318 = vmax.f32 %v310, 0.0
        %v319 = vmax.f32 %v311, 0.0
        %v320 = vadd.f32 %v312, 1e-05
        %v321 = vadd.f32 %v313, 1e-05
        %v322 = vadd.f32 %v314, 1e-05
        %v323 = vadd.f32 %v315, 1e-05
        %v324 = vadd.f32 %v316, 1e-05
        %v325 = vadd.f32 %v317, 1e-05
        %v326 = vadd.f32 %v318, 1e-05
        %v327 = vadd.f32 %v319, 1e-05
        %v328 = vrsqrt.pop %v320
        %v329 = vmul.f32 %v328, %v320
        %v330 = vmul.f32 %v329, %v328
        %v331 = vmul.f32 0.5, %v330
        %v332 = vsub.f32 1.5, %v331
        %v333 = vmul.f32 %v328, %v332
        %vm334 = vweird.f32 %v320
        %vm335 = vweird.f32 %v328
        %vm336 = vmor %vm334, %vm335
        %v337 = vsel %vm336, %v328, %v333
        %v338 = vrsqrt.pop %v321
        %v339 = vmul.f32 %v338, %v321
        %v340 = vmul.f32 %v339, %v338
        %v341 = vmul.f32 0.5, %v340
        %v342 = vsub.f32 1.5, %v341
        %v343 = vmul.f32 %v338, %v342
        %vm344 = vweird.f32 %v321
        %vm345 = vweird.f32 %v338
        %vm346 = vmor %vm344, %vm345
        %v347 = vsel %vm346, %v338, %v343
        %v348 = vrsqrt.pop %v322
        %v349 = vmul.f32 %v348, %v322
        %v350 = vmul.f32 %v349, %v348
        %v351 = vmul.f32 0.5, %v350
        %v352 = vsub.f32 1.5, %v351
        %v353 = vmul.f32 %v348, %v352
        %vm354 = vweird.f32 %v322
        %vm355 = vweird.f32 %v348
        %vm356 = vmor %vm354, %vm355
        %v357 = vsel %vm356, %v348, %v353
        %v358 = vrsqrt.pop %v323
        %v359 = vmul.f32 %v358, %v323
        %v360 = vmul.f32 %v359, %v358
        %v361 = vmul.f32 0.5, %v360
        %v362 = vsub.f32 1.5, %v361
        %v363 = vmul.f32 %v358, %v362
        %vm364 = vweird.f32 %v323
        %vm365 = vweird.f32 %v358
        %vm366 = vmor %vm364, %vm365
        %v367 = vsel %vm366, %v358, %v363
        %v368 = vrsqrt.pop %v324
        %v369 = vmul.f32 %v368, %v324
        %v370 = vmul.f32 %v369, %v368
        %v371 = vmul.f32 0.5, %v370
        %v372 = vsub.f32 1.5, %v371
        %v373 = vmul.f32 %v368, %v372
        %vm374 = vweird.f32 %v324
        %vm375 = vweird.f32 %v368
        %vm376 = vmor %vm374, %vm375
        %v377 = vsel %vm376, %v368, %v373
        %v378 = vrsqrt.pop %v325
        %v379 = vmul.f32 %v378, %v325
        %v380 = vmul.f32 %v379, %v378
        %v381 = vmul.f32 0.5, %v380
        %v382 = vsub.f32 1.5, %v381
        %v383 = vmul.f32 %v378, %v382
        %vm384 = vweird.f32 %v325
        %vm385 = vweird.f32 %v378
        %vm386 = vmor %vm384, %vm385
        %v387 = vsel %vm386, %v378, %v383
        %v388 = vrsqrt.pop %v326
        %v389 = vmul.f32 %v388, %v326
        %v390 = vmul.f32 %v389, %v388
        %v391 = vmul.f32 0.5, %v390
        %v392 = vsub.f32 1.5, %v391
        %v393 = vmul.f32 %v388, %v392
        %vm394 = vweird.f32 %v326
        %vm395 = vweird.f32 %v388
        %vm396 = vmor %vm394, %vm395
        %v397 = vsel %vm396, %v388, %v393
        %v398 = vrsqrt.pop %v327
        %v399 = vmul.f32 %v398, %v327
        %v400 = vmul.f32 %v399, %v398
        %v401 = vmul.f32 0.5, %v400
        %v402 = vsub.f32 1.5, %v401
        %v403 = vmul.f32 %v398, %v402
        %vm404 = vweird.f32 %v327
        %vm405 = vweird.f32 %v398
        %vm406 = vmor %vm404, %vm405
        %v407 = vsel %vm406, %v398, %v403
        %v408 = vmul.f32 %v248, %v337
        %v409 = vmul.f32 %v249, %v347
        %v410 = vmul.f32 %v250, %v357
        %v411 = vmul.f32 %v251, %v367
        %v412 = vmul.f32 %v252, %v377
        %v413 = vmul.f32 %v253, %v387
        %v414 = vmul.f32 %v254, %v397
        %v415 = vmul.f32 %v255, %v407
        %v416 = vmul.f32 %v408, 0.2
        %v417 = vmul.f32 %v409, 0.2
        %v418 = vmul.f32 %v410, 0.2
        %v419 = vmul.f32 %v411, 0.2
        %v420 = vmul.f32 %v412, 0.2
        %v421 = vmul.f32 %v413, 0.2
        %v422 = vmul.f32 %v414, 0.2
        %v423 = vmul.f32 %v415, 0.2
        %v424 = vmax.f32 %v408, %v416
        %v425 = vmax.f32 %v409, %v417
        %v426 = vmax.f32 %v410, %v418
        %v427 = vmax.f32 %v411, %v419
        %v428 = vmax.f32 %v412, %v420
        %v429 = vmax.f32 %v413, %v421
        %v430 = vmax.f32 %v414, %v422
        %v431 = vmax.f32 %v415, %v423
        %432 = vst [vmem:[%s136] sm:$0xff] %v424
        %433 = vst [vmem:[%s136 + $0x8] sm:$0xff] %v425
        %434 = vst [vmem:[%s136 + $0x10] sm:$0xff] %v426
        %435 = vst [vmem:[%s136 + $0x18] sm:$0xff] %v427
        %436 = vst [vmem:[%s136 + $0x20] sm:$0xff] %v428
        %437 = vst [vmem:[%s136 + $0x28] sm:$0xff] %v429
        %438 = vst [vmem:[%s136 + $0x30] sm:$0xff] %v430
        %439 = vst [vmem:[%s136 + $0x38] sm:$0xff] %v431
        %s440 = sand.u32 %s71, 1
        %s441 = scalar_lea.sflag [#allocation3], %s440
        %s442 = sand.u32 %s71, 1
        %s443 = smul.addr %s442, 64
        %s444 = scalar_lea.vmem [#allocation2], %s443
        // Predicated region
        $region29: #{tpu_custom_call.1} parent=27 // pred_check
          %p445 = pneg %p81
        $region30: #{tpu_custom_call.1} parent=27 // pred_check_branch
          %447 = sbr.rel (%p445) target = $region32
        $region31: #{tpu_custom_call.1} parent=27 // pred_region
          %449 = vsyncadd %s441, 0
          %s450 = smul.addr %s16, 8
          %s451 = smul.addr %s450, 8
          %s452 = scalar_lea.hbm %s2, %s451
          %s453 = sshll.u32 %s444, 4
          %s454 = int_to_ptr.vmem [resolvable:$true] %s453
          %s455 = sshll.u32 %s452, 4
          %s456 = int_to_ptr.hbm [resolvable:$true] %s455
          %461 = dma.vmem_to_hbm [thread:$0]  %s454, 1024, %s456, %s441, 128, 128, 8
        $region32: #{tpu_custom_call.1} parent=27 // pred_fallthru
          _
      $region28: #{tpu_custom_call.1} parent=5 // pred_fallthru
        _
      %p462 = scmp.le.s32.totalorder 2, %s11
      // Predicated region
      $region33: #{tpu_custom_call.1} parent=5 // pred_check
        %p463 = pneg %p462
      $region34: #{tpu_custom_call.1} parent=5 // pred_check_branch
        %465 = sbr.rel (%p463) target = $region36
      $region35: #{tpu_custom_call.1} parent=5 // pred_region
        %s466 = ssub.s32 %s11, 2
        // Predicated region
        $region37: #{tpu_custom_call.1} parent=35 // pred_check
          %p467 = pneg %p87
        $region38: #{tpu_custom_call.1} parent=35 // pred_check_branch
          %469 = sbr.rel (%p467) target = $region40
        $region39: #{tpu_custom_call.1} parent=35 // pred_region
          %s470 = sand.u32 %s72, 1
          %s471 = scalar_lea.sflag [#allocation3], %s470
          %s472 = sand.u32 %s72, 1
          %s473 = smul.addr %s472, 64
          %s474 = scalar_lea.vmem [#allocation2], %s473
          %476 = dma.done %s471, 1024
        $region40: #{tpu_custom_call.1} parent=35 // pred_fallthru
          _
      $region36: #{tpu_custom_call.1} parent=5 // pred_fallthru
        _
    $region6: #{tpu_custom_call.1} parent=1 // loop_footer
      %s15 = sadd.s32 1, %s11
    $region7: #{tpu_custom_call.1} parent=1 // loop_footer_branch
      %10 = sbr.rel target = $region3
    $region8: #{tpu_custom_call.1} parent=1 // loop_exit
      _
    %477 = vsyncpa [#allocation3], 1
    %s478 = scalar_lea.sflag [#allocation3], 1
    %479 = vsyncpa %s478, 1

</llo_original>
